<compile_context>
chip_gen: v6e
topology: v6e:2x2x1
jax: 0.10.0
libtpu: 0.0.40
codegen_flags: <defaults>
</compile_context>

<pallas_src>
import functools
import math

import jax
import jax.numpy as jnp
from jax.experimental import pallas as pl
from jax.experimental.pallas import tpu as pltpu


# ----------------------------------------------------------------------------
# Kernel: rows of x -> sqrt(D) * x / max(||x||_2, eps)
# ----------------------------------------------------------------------------
def _norm_kernel(x_ref, o_ref, *, eps: float, scale: float):
    x = x_ref[...].astype(jnp.float32)                      # (TB, D), stats in f32
    ss = jnp.sum(x * x, axis=-1, keepdims=True)             # (TB, 1)
    # max(sqrt(ss), eps) == sqrt(max(ss, eps^2)); one EUP rsqrt instead of
    # sqrt + max + divide.  eps^2 = 1e-24 is a normal f32 value.
    inv = jax.lax.rsqrt(jnp.maximum(ss, eps * eps))         # (TB, 1)
    o_ref[...] = (x * (scale * inv)).astype(o_ref.dtype)


def _round_up(n: int, m: int) -> int:
    return ((n + m - 1) // m) * m


def _physical_vmem_bytes() -> int:
    try:
        return int(pltpu.get_tpu_info().vmem_capacity_bytes)
    except Exception:
        # Conservative default (v5e/v6e physical VMEM).
        return 128 * 1024 * 1024


def norm(x, *, eps: float = 1e-12):
    """sqrt(D) * F.normalize(x, dim=-1) for any leading shape."""
    orig_shape = x.shape
    d = orig_shape[-1]
    rows = math.prod(orig_shape[:-1]) if len(orig_shape) > 1 else 1
    x2 = x.reshape(rows, d)

    itemsize = jnp.dtype(x.dtype).itemsize
    # Packed sublane granularity: 8 (32-bit), 16 (bf16/f16), 32 (int8/fp8).
    granule = 8 * max(1, 4 // max(1, itemsize))

    # Byte-budgeted row tile.  4 live buffers (double-buffered in + out);
    # keep their total within min(physical_VMEM/4, 32 MiB) so each tile is
    # multiple MiB (hides the ~0.35 us/step overhead) yet fits every
    # generation (v7x: 64 MiB physical -> ~16 MiB footprint).
    phys_vmem = _physical_vmem_bytes()
    total_budget = min(phys_vmem // 4, 32 << 20)
    bytes_per_row = d * itemsize
    tb = total_budget // (4 * bytes_per_row)
    tb = max(granule, (tb // granule) * granule)
    tb = min(tb, _round_up(rows, granule))          # never exceed (padded) rows

    # Scoped-VMEM limit sized to the enlarged footprint (+ headroom), capped
    # below physical so v7x (64 MiB) never over-asks; v5e's 16 MiB default
    # would otherwise reject these blocks.
    footprint = 4 * tb * bytes_per_row
    vmem_limit = min(max(32 << 20, footprint + (8 << 20)), phys_vmem - (8 << 20))

    # Ragged last block instead of pad+slice: rows are independent, so the
    # out-of-bounds tail of the final block is computed on don't-care data and
    # its writes are dropped -- no extra HBM passes.
    grid = (pl.cdiv(rows, tb),)

    # TODO(synk): for D < 128 (e.g. D=32) every store is a masked partial vst;
    # packing 128//D rows per lane row before the call would make the output
    # lane-dense, but needs a segmented in-vreg reduction -- left as-is.

    kernel = functools.partial(_norm_kernel, eps=eps, scale=math.sqrt(d))
    out = pl.pallas_call(
        kernel,
        out_shape=jax.ShapeDtypeStruct((rows, d), x.dtype),
        grid=grid,
        in_specs=[pl.BlockSpec((tb, d), lambda i: (i, 0))],
        out_specs=pl.BlockSpec((tb, d), lambda i: (i, 0)),
        compiler_params=pltpu.CompilerParams(
            dimension_semantics=("parallel",),
            vmem_limit_bytes=int(vmem_limit),
        ),
    )(x2)

    return out.reshape(orig_shape)


# ----------------------------------------------------------------------------
# Pure-JAX reference (mirrors torch: sqrt(D) * x / clamp_min(||x||_2, eps)).
# ----------------------------------------------------------------------------
def norm_ref(x, eps: float = 1e-12):
    n = jnp.sqrt(jnp.sum(jnp.square(x), axis=-1, keepdims=True))
    return math.sqrt(x.shape[-1]) * x / jnp.maximum(n, eps)


if __name__ == "__main__":
    key = jax.random.PRNGKey(0)
    k1, k2, k3 = jax.random.split(key, 3)

    # Main case: lane-dense last dim (multiple of 128).
    x1 = jax.random.normal(k1, (2, 8, 16, 128), jnp.float32)
    y1 = jax.block_until_ready(jax.jit(norm)(x1))
    assert y1.shape == x1.shape, y1.shape
    assert jnp.allclose(y1, norm_ref(x1), atol=1e-5, rtol=1e-5), (
        float(jnp.max(jnp.abs(y1 - norm_ref(x1)))))

    # Coverage case: ragged row count (not a multiple of the tile) and small
    # (non-128) feature dim -> exercises the ragged last block.
    x2 = jax.random.normal(k2, (3, 5, 32), jnp.float32)
    y2 = jax.block_until_ready(jax.jit(norm)(x2))
    assert y2.shape == x2.shape, y2.shape
    assert jnp.allclose(y2, norm_ref(x2), atol=1e-5, rtol=1e-5), (
        float(jnp.max(jnp.abs(y2 - norm_ref(x2)))))

    # bf16 input: exercises packed-sublane (granule=16) tiling and f32 stats.
    x3 = jax.random.normal(k3, (4, 24, 128), jnp.float32).astype(jnp.bfloat16)
    y3 = jax.block_until_ready(jax.jit(norm)(x3))
    assert y3.shape == x3.shape, y3.shape
    assert jnp.allclose(y3.astype(jnp.float32),
                        norm_ref(x3.astype(jnp.float32)),
                        atol=3e-2, rtol=3e-2), (
        float(jnp.max(jnp.abs(y3.astype(jnp.float32)
                              - norm_ref(x3.astype(jnp.float32))))))

    print("KERNEL_OK")
</pallas_src>

<mosaic_0001>
module attributes {stable_mosaic.version = 11 : i64} {
  func.func @_norm_kernel(%arg0: i32, %arg1: memref<256x128xf32, #tpu.memory_space<vmem>>, %arg2: memref<256x128xf32, #tpu.memory_space<vmem>>) attributes {dimension_semantics = [#tpu.dimension_semantics<parallel>], iteration_bounds = array<i64: 1>, scalar_prefetch = 0 : i64, scratch_operands = 0 : i64, tpu.core_type = #tpu.core_type<tc>, window_params = [{transform_indices = @transform_0, window_bounds = array<i64: 256, 128>}, {transform_indices = @transform_1, window_bounds = array<i64: 256, 128>}]} {
    %c0 = arith.constant 0 : index
    %c0_0 = arith.constant 0 : index
    %0 = vector.load %arg1[%c0, %c0_0] : memref<256x128xf32, #tpu.memory_space<vmem>>, vector<256x128xf32>
    %1 = arith.mulf %0, %0 : vector<256x128xf32>
    %cst = arith.constant dense<0.000000e+00> : vector<256xf32>
    %2 = vector.multi_reduction <add>, %1, %cst [1] : vector<256x128xf32> to vector<256xf32>
    %3 = vector.shape_cast %2 : vector<256xf32> to vector<256x1xf32>
    %cst_1 = arith.constant 1.000000e-24 : f32
    %4 = vector.broadcast %cst_1 : f32 to vector<256x1xf32>
    %5 = arith.maximumf %3, %4 : vector<256x1xf32>
    %6 = math.rsqrt %5 : vector<256x1xf32>
    %cst_2 = arith.constant 11.3137083 : f32
    %7 = vector.broadcast %cst_2 : f32 to vector<256x1xf32>
    %8 = arith.mulf %7, %6 : vector<256x1xf32>
    %9 = vector.broadcast %8 : vector<256x1xf32> to vector<256x128xf32>
    %10 = arith.mulf %0, %9 : vector<256x128xf32>
    %c0_3 = arith.constant 0 : index
    %c0_4 = arith.constant 0 : index
    %11 = vector.load %arg2[%c0_3, %c0_4] : memref<256x128xf32, #tpu.memory_space<vmem>>, vector<256x128xf32>
    tpu.vector_store %arg2[%c0_3, %c0_4], %10 {strides = array<i32>} : memref<256x128xf32, #tpu.memory_space<vmem>>, vector<256x128xf32>,
    return
  }
  func.func @transform_0(%arg0: i32) -> (i32, i32) {
    %c0_i32 = arith.constant 0 : i32
    %c0_i32_0 = arith.constant 0 : i32
    return %arg0, %c0_i32 : i32, i32
  }
  func.func @transform_1(%arg0: i32) -> (i32, i32) {
    %c0_i32 = arith.constant 0 : i32
    %c0_i32_0 = arith.constant 0 : i32
    return %arg0, %c0_i32 : i32, i32
  }
}

</mosaic_0001>

<llo_original>
// kernel: norm.1
$region0: #{norm.1}
  #allocation0 [shape = 'u32[]', space=smem, size = 0x4, offset = 0x4, fixed_abs, tag = 'smem constant byte address 0x4 - core index']
  #allocation1 [shape = 'u32[144,128]{1,0:T(1,128)}', space=vmem, size = 0x12000, scoped, tag = 'internal scratch']
  %s0 = inlined_call_operand.hbm [shape: f32[256,128], index: 0, kind: input, shape index: {}]
  %s1 = inlined_call_operand.hbm [shape: f32[256,128], index: 1, kind: output, shape index: {}]
  %s2 = sld [smem:[#allocation0]]
  $region18: #{norm.1} parent=0
    _
  %s4 = ssub.s32 1, %s2
  %s5 = scalar_select 0, %s4, %s2
  $region1: #{norm.1} parent=0
    #allocation2 [shape = 'u8[131072]{0}', space=vmem, size = 0x20000, scoped, tag = 'input window, operand 0, single buffered']
    #allocation3 [shape = 's32[1]{0}', space=sflag, size = 0x4, scoped, tag = 'scoped memory for norm.1']
    #allocation4 [shape = 's32[1]{0}', space=sflag, size = 0x4, scoped, tag = 'scoped memory for norm.1']
    #allocation5 [shape = 'u8[131072]{0}', space=vmem, size = 0x20000, scoped, tag = 'output window, operand 0, single buffered']
    %6 = vsyncpa [#allocation3], 0
    %7 = vsyncpa [#allocation4], 0
    // Predicated region
    $region2: #{norm.1} parent=1 // pred_check
      _
    $region3: #{norm.1} parent=1 // pred_check_branch
      %9 = sbr.rel (0) target = $region5
    $region4: #{norm.1} parent=1 // pred_region
      %s11 = ssub.s32 4096, 4096
      %12 = vsyncadd [#allocation3], %s11
      %s13 = sshll.u32 [#allocation2], 4
      %s14 = int_to_ptr.vmem [resolvable:$true] %s13
      %19 = dma.hbm_to_vmem [thread:$0]  %s0, 4096, %s14, [#allocation3], 128, 128, 8
    $region5: #{norm.1} parent=1 // pred_fallthru
      _
    // Predicated region
    $region6: #{norm.1} parent=1 // pred_check
      _
    $region7: #{norm.1} parent=1 // pred_check_branch
      %21 = sbr.rel (0) target = $region9
    $region8: #{norm.1} parent=1 // pred_region
      %22 = dma.done [#allocation3], 4096
    $region9: #{norm.1} parent=1 // pred_fallthru
      _
    %v23 = vld [vmem:[#allocation2] sm:$0xff]
    %v24 = vld [vmem:[#allocation2 + $0x8] sm:$0xff]
    %v25 = vld [vmem:[#allocation2 + $0x10] sm:$0xff]
    %v26 = vld [vmem:[#allocation2 + $0x18] sm:$0xff]
    %v27 = vld [vmem:[#allocation2 + $0x20] sm:$0xff]
    %v28 = vld [vmem:[#allocation2 + $0x28] sm:$0xff]
    %v29 = vld [vmem:[#allocation2 + $0x30] sm:$0xff]
    %v30 = vld [vmem:[#allocation2 + $0x38] sm:$0xff]
    %v31 = vld [vmem:[#allocation2 + $0x40] sm:$0xff]
    %v32 = vld [vmem:[#allocation2 + $0x48] sm:$0xff]
    %v33 = vld [vmem:[#allocation2 + $0x50] sm:$0xff]
    %v34 = vld [vmem:[#allocation2 + $0x58] sm:$0xff]
    %v35 = vld [vmem:[#allocation2 + $0x60] sm:$0xff]
    %v36 = vld [vmem:[#allocation2 + $0x68] sm:$0xff]
    %v37 = vld [vmem:[#allocation2 + $0x70] sm:$0xff]
    %v38 = vld [vmem:[#allocation2 + $0x78] sm:$0xff]
    %v39 = vld [vmem:[#allocation2 + $0x80] sm:$0xff]
    %v40 = vld [vmem:[#allocation2 + $0x88] sm:$0xff]
    %v41 = vld [vmem:[#allocation2 + $0x90] sm:$0xff]
    %v42 = vld [vmem:[#allocation2 + $0x98] sm:$0xff]
    %v43 = vld [vmem:[#allocation2 + $0xa0] sm:$0xff]
    %v44 = vld [vmem:[#allocation2 + $0xa8] sm:$0xff]
    %v45 = vld [vmem:[#allocation2 + $0xb0] sm:$0xff]
    %v46 = vld [vmem:[#allocation2 + $0xb8] sm:$0xff]
    %v47 = vld [vmem:[#allocation2 + $0xc0] sm:$0xff]
    %v48 = vld [vmem:[#allocation2 + $0xc8] sm:$0xff]
    %v49 = vld [vmem:[#allocation2 + $0xd0] sm:$0xff]
    %v50 = vld [vmem:[#allocation2 + $0xd8] sm:$0xff]
    %v51 = vld [vmem:[#allocation2 + $0xe0] sm:$0xff]
    %v52 = vld [vmem:[#allocation2 + $0xe8] sm:$0xff]
    %v53 = vld [vmem:[#allocation2 + $0xf0] sm:$0xff]
    %v54 = vld [vmem:[#allocation2 + $0xf8] sm:$0xff]
    %v55 = vmul.f32 %v23, %v23
    %v56 = vmul.f32 %v24, %v24
    %v57 = vmul.f32 %v25, %v25
    %v58 = vmul.f32 %v26, %v26
    %v59 = vmul.f32 %v27, %v27
    %v60 = vmul.f32 %v28, %v28
    %v61 = vmul.f32 %v29, %v29
    %v62 = vmul.f32 %v30, %v30
    %v63 = vmul.f32 %v31, %v31
    %v64 = vmul.f32 %v32, %v32
    %v65 = vmul.f32 %v33, %v33
    %v66 = vmul.f32 %v34, %v34
    %v67 = vmul.f32 %v35, %v35
    %v68 = vmul.f32 %v36, %v36
    %v69 = vmul.f32 %v37, %v37
    %v70 = vmul.f32 %v38, %v38
    %v71 = vmul.f32 %v39, %v39
    %v72 = vmul.f32 %v40, %v40
    %v73 = vmul.f32 %v41, %v41
    %v74 = vmul.f32 %v42, %v42
    %v75 = vmul.f32 %v43, %v43
    %v76 = vmul.f32 %v44, %v44
    %v77 = vmul.f32 %v45, %v45
    %v78 = vmul.f32 %v46, %v46
    %v79 = vmul.f32 %v47, %v47
    %v80 = vmul.f32 %v48, %v48
    %v81 = vmul.f32 %v49, %v49
    %v82 = vmul.f32 %v50, %v50
    %v83 = vmul.f32 %v51, %v51
    %v84 = vmul.f32 %v52, %v52
    %v85 = vmul.f32 %v53, %v53
    %v86 = vmul.f32 %v54, %v54
    %87 = vadd.xlane.f32.xlu0 %v55
    %v88 = vpop.xlane.xlu0 %87
    %89 = vadd.xlane.f32.xlu0 %v56
    %v90 = vpop.xlane.xlu0 %89
    %91 = vadd.xlane.f32.xlu0 %v57
    %v92 = vpop.xlane.xlu0 %91
    %93 = vadd.xlane.f32.xlu0 %v58
    %v94 = vpop.xlane.xlu0 %93
    %95 = vadd.xlane.f32.xlu0 %v59
    %v96 = vpop.xlane.xlu0 %95
    %97 = vadd.xlane.f32.xlu0 %v60
    %v98 = vpop.xlane.xlu0 %97
    %99 = vadd.xlane.f32.xlu0 %v61
    %v100 = vpop.xlane.xlu0 %99
    %101 = vadd.xlane.f32.xlu0 %v62
    %v102 = vpop.xlane.xlu0 %101
    %103 = vadd.xlane.f32.xlu0 %v63
    %v104 = vpop.xlane.xlu0 %103
    %105 = vadd.xlane.f32.xlu0 %v64
    %v106 = vpop.xlane.xlu0 %105
    %107 = vadd.xlane.f32.xlu0 %v65
    %v108 = vpop.xlane.xlu0 %107
    %109 = vadd.xlane.f32.xlu0 %v66
    %v110 = vpop.xlane.xlu0 %109
    %111 = vadd.xlane.f32.xlu0 %v67
    %v112 = vpop.xlane.xlu0 %111
    %113 = vadd.xlane.f32.xlu0 %v68
    %v114 = vpop.xlane.xlu0 %113
    %115 = vadd.xlane.f32.xlu0 %v69
    %v116 = vpop.xlane.xlu0 %115
    %117 = vadd.xlane.f32.xlu0 %v70
    %v118 = vpop.xlane.xlu0 %117
    %119 = vadd.xlane.f32.xlu0 %v71
    %v120 = vpop.xlane.xlu0 %119
    %121 = vadd.xlane.f32.xlu0 %v72
    %v122 = vpop.xlane.xlu0 %121
    %123 = vadd.xlane.f32.xlu0 %v73
    %v124 = vpop.xlane.xlu0 %123
    %125 = vadd.xlane.f32.xlu0 %v74
    %v126 = vpop.xlane.xlu0 %125
    %127 = vadd.xlane.f32.xlu0 %v75
    %v128 = vpop.xlane.xlu0 %127
    %129 = vadd.xlane.f32.xlu0 %v76
    %v130 = vpop.xlane.xlu0 %129
    %131 = vadd.xlane.f32.xlu0 %v77
    %v132 = vpop.xlane.xlu0 %131
    %133 = vadd.xlane.f32.xlu0 %v78
    %v134 = vpop.xlane.xlu0 %133
    %135 = vadd.xlane.f32.xlu0 %v79
    %v136 = vpop.xlane.xlu0 %135
    %137 = vadd.xlane.f32.xlu0 %v80
    %v138 = vpop.xlane.xlu0 %137
    %139 = vadd.xlane.f32.xlu0 %v81
    %v140 = vpop.xlane.xlu0 %139
    %141 = vadd.xlane.f32.xlu0 %v82
    %v142 = vpop.xlane.xlu0 %141
    %143 = vadd.xlane.f32.xlu0 %v83
    %v144 = vpop.xlane.xlu0 %143
    %145 = vadd.xlane.f32.xlu0 %v84
    %v146 = vpop.xlane.xlu0 %145
    %147 = vadd.xlane.f32.xlu0 %v85
    %v148 = vpop.xlane.xlu0 %147
    %149 = vadd.xlane.f32.xlu0 %v86
    %v150 = vpop.xlane.xlu0 %149
    %v151 = vmax.f32 %v88, 1e-24
    %v152 = vmax.f32 %v90, 1e-24
    %v153 = vmax.f32 %v92, 1e-24
    %v154 = vmax.f32 %v94, 1e-24
    %v155 = vmax.f32 %v96, 1e-24
    %v156 = vmax.f32 %v98, 1e-24
    %v157 = vmax.f32 %v100, 1e-24
    %v158 = vmax.f32 %v102, 1e-24
    %v159 = vmax.f32 %v104, 1e-24
    %v160 = vmax.f32 %v106, 1e-24
    %v161 = vmax.f32 %v108, 1e-24
    %v162 = vmax.f32 %v110, 1e-24
    %v163 = vmax.f32 %v112, 1e-24
    %v164 = vmax.f32 %v114, 1e-24
    %v165 = vmax.f32 %v116, 1e-24
    %v166 = vmax.f32 %v118, 1e-24
    %v167 = vmax.f32 %v120, 1e-24
    %v168 = vmax.f32 %v122, 1e-24
    %v169 = vmax.f32 %v124, 1e-24
    %v170 = vmax.f32 %v126, 1e-24
    %v171 = vmax.f32 %v128, 1e-24
    %v172 = vmax.f32 %v130, 1e-24
    %v173 = vmax.f32 %v132, 1e-24
    %v174 = vmax.f32 %v134, 1e-24
    %v175 = vmax.f32 %v136, 1e-24
    %v176 = vmax.f32 %v138, 1e-24
    %v177 = vmax.f32 %v140, 1e-24
    %v178 = vmax.f32 %v142, 1e-24
    %v179 = vmax.f32 %v144, 1e-24
    %v180 = vmax.f32 %v146, 1e-24
    %v181 = vmax.f32 %v148, 1e-24
    %v182 = vmax.f32 %v150, 1e-24
    %v183 = vrsqrt.pop %v151
    %v184 = vrsqrt.pop %v152
    %v185 = vrsqrt.pop %v153
    %v186 = vrsqrt.pop %v154
    %v187 = vrsqrt.pop %v155
    %v188 = vrsqrt.pop %v156
    %v189 = vrsqrt.pop %v157
    %v190 = vrsqrt.pop %v158
    %v191 = vrsqrt.pop %v159
    %v192 = vrsqrt.pop %v160
    %v193 = vrsqrt.pop %v161
    %v194 = vrsqrt.pop %v162
    %v195 = vrsqrt.pop %v163
    %v196 = vrsqrt.pop %v164
    %v197 = vrsqrt.pop %v165
    %v198 = vrsqrt.pop %v166
    %v199 = vrsqrt.pop %v167
    %v200 = vrsqrt.pop %v168
    %v201 = vrsqrt.pop %v169
    %v202 = vrsqrt.pop %v170
    %v203 = vrsqrt.pop %v171
    %v204 = vrsqrt.pop %v172
    %v205 = vrsqrt.pop %v173
    %v206 = vrsqrt.pop %v174
    %v207 = vrsqrt.pop %v175
    %v208 = vrsqrt.pop %v176
    %v209 = vrsqrt.pop %v177
    %v210 = vrsqrt.pop %v178
    %v211 = vrsqrt.pop %v179
    %v212 = vrsqrt.pop %v180
    %v213 = vrsqrt.pop %v181
    %v214 = vrsqrt.pop %v182
    %v215 = vmul.f32 %v183, 11.313708
    %v216 = vmul.f32 %v184, 11.313708
    %v217 = vmul.f32 %v185, 11.313708
    %v218 = vmul.f32 %v186, 11.313708
    %v219 = vmul.f32 %v187, 11.313708
    %v220 = vmul.f32 %v188, 11.313708
    %v221 = vmul.f32 %v189, 11.313708
    %v222 = vmul.f32 %v190, 11.313708
    %v223 = vmul.f32 %v191, 11.313708
    %v224 = vmul.f32 %v192, 11.313708
    %v225 = vmul.f32 %v193, 11.313708
    %v226 = vmul.f32 %v194, 11.313708
    %v227 = vmul.f32 %v195, 11.313708
    %v228 = vmul.f32 %v196, 11.313708
    %v229 = vmul.f32 %v197, 11.313708
    %v230 = vmul.f32 %v198, 11.313708
    %v231 = vmul.f32 %v199, 11.313708
    %v232 = vmul.f32 %v200, 11.313708
    %v233 = vmul.f32 %v201, 11.313708
    %v234 = vmul.f32 %v202, 11.313708
    %v235 = vmul.f32 %v203, 11.313708
    %v236 = vmul.f32 %v204, 11.313708
    %v237 = vmul.f32 %v205, 11.313708
    %v238 = vmul.f32 %v206, 11.313708
    %v239 = vmul.f32 %v207, 11.313708
    %v240 = vmul.f32 %v208, 11.313708
    %v241 = vmul.f32 %v209, 11.313708
    %v242 = vmul.f32 %v210, 11.313708
    %v243 = vmul.f32 %v211, 11.313708
    %v244 = vmul.f32 %v212, 11.313708
    %v245 = vmul.f32 %v213, 11.313708
    %v246 = vmul.f32 %v214, 11.313708
    %v247 = vmul.f32 %v23, %v215
    %v248 = vmul.f32 %v24, %v216
    %v249 = vmul.f32 %v25, %v217
    %v250 = vmul.f32 %v26, %v218
    %v251 = vmul.f32 %v27, %v219
    %v252 = vmul.f32 %v28, %v220
    %v253 = vmul.f32 %v29, %v221
    %v254 = vmul.f32 %v30, %v222
    %v255 = vmul.f32 %v31, %v223
    %v256 = vmul.f32 %v32, %v224
    %v257 = vmul.f32 %v33, %v225
    %v258 = vmul.f32 %v34, %v226
    %v259 = vmul.f32 %v35, %v227
    %v260 = vmul.f32 %v36, %v228
    %v261 = vmul.f32 %v37, %v229
    %v262 = vmul.f32 %v38, %v230
    %v263 = vmul.f32 %v39, %v231
    %v264 = vmul.f32 %v40, %v232
    %v265 = vmul.f32 %v41, %v233
    %v266 = vmul.f32 %v42, %v234
    %v267 = vmul.f32 %v43, %v235
    %v268 = vmul.f32 %v44, %v236
    %v269 = vmul.f32 %v45, %v237
    %v270 = vmul.f32 %v46, %v238
    %v271 = vmul.f32 %v47, %v239
    %v272 = vmul.f32 %v48, %v240
    %v273 = vmul.f32 %v49, %v241
    %v274 = vmul.f32 %v50, %v242
    %v275 = vmul.f32 %v51, %v243
    %v276 = vmul.f32 %v52, %v244
    %v277 = vmul.f32 %v53, %v245
    %v278 = vmul.f32 %v54, %v246
    %279 = vst [vmem:[#allocation5] sm:$0xff] %v247
    %280 = vst [vmem:[#allocation5 + $0x8] sm:$0xff] %v248
    %281 = vst [vmem:[#allocation5 + $0x10] sm:$0xff] %v249
    %282 = vst [vmem:[#allocation5 + $0x18] sm:$0xff] %v250
    %283 = vst [vmem:[#allocation5 + $0x20] sm:$0xff] %v251
    %284 = vst [vmem:[#allocation5 + $0x28] sm:$0xff] %v252
    %285 = vst [vmem:[#allocation5 + $0x30] sm:$0xff] %v253
    %286 = vst [vmem:[#allocation5 + $0x38] sm:$0xff] %v254
    %287 = vst [vmem:[#allocation5 + $0x40] sm:$0xff] %v255
    %288 = vst [vmem:[#allocation5 + $0x48] sm:$0xff] %v256
    %289 = vst [vmem:[#allocation5 + $0x50] sm:$0xff] %v257
    %290 = vst [vmem:[#allocation5 + $0x58] sm:$0xff] %v258
    %291 = vst [vmem:[#allocation5 + $0x60] sm:$0xff] %v259
    %292 = vst [vmem:[#allocation5 + $0x68] sm:$0xff] %v260
    %293 = vst [vmem:[#allocation5 + $0x70] sm:$0xff] %v261
    %294 = vst [vmem:[#allocation5 + $0x78] sm:$0xff] %v262
    %295 = vst [vmem:[#allocation5 + $0x80] sm:$0xff] %v263
    %296 = vst [vmem:[#allocation5 + $0x88] sm:$0xff] %v264
    %297 = vst [vmem:[#allocation5 + $0x90] sm:$0xff] %v265
    %298 = vst [vmem:[#allocation5 + $0x98] sm:$0xff] %v266
    %299 = vst [vmem:[#allocation5 + $0xa0] sm:$0xff] %v267
    %300 = vst [vmem:[#allocation5 + $0xa8] sm:$0xff] %v268
    %301 = vst [vmem:[#allocation5 + $0xb0] sm:$0xff] %v269
    %302 = vst [vmem:[#allocation5 + $0xb8] sm:$0xff] %v270
    %303 = vst [vmem:[#allocation5 + $0xc0] sm:$0xff] %v271
    %304 = vst [vmem:[#allocation5 + $0xc8] sm:$0xff] %v272
    %305 = vst [vmem:[#allocation5 + $0xd0] sm:$0xff] %v273
    %306 = vst [vmem:[#allocation5 + $0xd8] sm:$0xff] %v274
    %307 = vst [vmem:[#allocation5 + $0xe0] sm:$0xff] %v275
    %308 = vst [vmem:[#allocation5 + $0xe8] sm:$0xff] %v276
    %309 = vst [vmem:[#allocation5 + $0xf0] sm:$0xff] %v277
    %310 = vst [vmem:[#allocation5 + $0xf8] sm:$0xff] %v278
    // Predicated region
    $region10: #{norm.1} parent=1 // pred_check
      _
    $region11: #{norm.1} parent=1 // pred_check_branch
      %312 = sbr.rel (0) target = $region13
    $region12: #{norm.1} parent=1 // pred_region
      %s314 = ssub.s32 4096, 4096
      %315 = vsyncadd [#allocation4], %s314
      %s316 = sshll.u32 [#allocation5], 4
      %s317 = int_to_ptr.vmem [resolvable:$true] %s316
      %322 = dma.vmem_to_hbm [thread:$0]  %s317, 4096, %s1, [#allocation4], 128, 128, 8
    $region13: #{norm.1} parent=1 // pred_fallthru
      _
    // Predicated region
    $region14: #{norm.1} parent=1 // pred_check
      _
    $region15: #{norm.1} parent=1 // pred_check_branch
      %324 = sbr.rel (0) target = $region17
    $region16: #{norm.1} parent=1 // pred_region
      %325 = dma.done [#allocation4], 4096
    $region17: #{norm.1} parent=1 // pred_fallthru
      _
    %326 = vsyncpa [#allocation3], 1
    %327 = vsyncpa [#allocation4], 1

</llo_original>
